<compile_context>
chip_gen: v7x
topology: tpu7x:2x2x1
jax: 0.10.0
libtpu: 0.0.40
codegen_flags: <defaults>
</compile_context>

<pallas_src>
import functools

import jax
import jax.numpy as jnp
from jax.experimental import pallas as pl
from jax.experimental.pallas import tpu as pltpu


def _logsoftmax_loss_kernel(x_ref, a_ref, o_ref, *, true_b, tb, nb_half):
    c = pl.program_id(0)   # core split (parallel)
    i = pl.program_id(1)   # batch tiles for this core (arbitrary / reduction)

    # Zero this core's resident accumulator block on its first batch tile.
    @pl.when(i == 0)
    def _():
        o_ref[...] = jnp.zeros_like(o_ref)

    # Global block / row indices; mask rows past the true batch size so the
    # ragged last tile (and any fully-out-of-range duplicate block on the
    # second core) contributes exactly zero.  Two cheap VPU selects per
    # element replace the wrapper-side jnp.pad HBM copy.
    blk = c * nb_half + i
    row_ids = blk * tb + jax.lax.broadcasted_iota(jnp.int32, (tb, 1), 0)
    valid = row_ids < true_b                                          # (TB, 1)

    x = jnp.where(valid, x_ref[...].astype(jnp.float32), 0.0)        # (TB, C)
    a = jnp.where(valid, a_ref[...].astype(jnp.float32), 0.0)        # (TB, C)

    # Numerically stable row-wise logsumexp.
    m = jnp.max(x, axis=1, keepdims=True)                             # (TB, 1)
    lse = jnp.log(jnp.sum(jnp.exp(x - m), axis=1, keepdims=True)) + m  # (TB, 1)

    # Per-row weighted NLL, computed directly (no lse*sum(a)-sum(a*x) fold).
    sum_a = jnp.sum(a, axis=1, keepdims=True)                         # (TB, 1)
    wnll = jnp.sum((lse - x) * a, axis=1, keepdims=True)              # (TB, 1)
    denom = jnp.maximum(sum_a, 1.0)                                   # clamp(min=1)

    block_sum = jnp.sum(wnll / denom)                                 # scalar
    # Accumulate directly into the resident output block (broadcast over the
    # lane-dense (1, 8, 128) block -> unmasked stores); written back to HBM
    # only when the core index changes / at the end.
    o_ref[...] += block_sum


def log_softmax_loss(x, a, dim=1, *, tb=None, vmem_budget_bytes=40 << 20):
    """Pallas implementation of LogSoftmax(dim=1).forward(x, a) for 2-D inputs."""
    assert dim == 1, "kernel implements dim=1 (matches a.sum(1) in the module)"
    assert x.ndim == 2 and x.shape == a.shape
    B, C = x.shape

    x_item = jnp.dtype(x.dtype).itemsize
    a_item = jnp.dtype(a.dtype).itemsize

    # Sublane multiple for the narrower (more packed) input dtype:
    # f32 -> 8, bf16 -> 16, int8/fp8 -> 32.
    min_item = min(x_item, a_item)
    sublane_mult = 8 * max(1, 4 // min_item)

    if tb is None:
        # HBM-bound: target ~4 MiB per input block, subject to the full VMEM
        # footprint (2 inputs x 2 pipeline buffers at input itemsize + ~4 f32
        # tile-sized temporaries) fitting the budget with ~4 MiB headroom.
        per_row_vmem = 2 * C * (x_item + a_item) + 4 * C * 4
        tb_blk = max((4 << 20) // (C * max(x_item, a_item)), 1)
        tb_vmem = max(vmem_budget_bytes - (4 << 20), per_row_vmem) // per_row_vmem
        tb = max(min(tb_blk, tb_vmem), sublane_mult)

    tb = max(sublane_mult, (int(tb) // sublane_mult) * sublane_mult)
    # Don't over-pad tiny batches.
    tb = min(tb, ((B + sublane_mult - 1) // sublane_mult) * sublane_mult)

    nb_total = pl.cdiv(B, tb)
    n_cores = 2                       # leading parallel axis; harmless on 1-TC chips
    nb_half = pl.cdiv(nb_total, n_cores)

    # VMEM limit that actually counts the f32 intermediates (x, a, exp(x-m),
    # (lse-x)*a) on top of the double-buffered input tiles; capped well under
    # v7x's 64 MiB physical VMEM.
    in_bytes = 2 * tb * C * (x_item + a_item)
    tmp_bytes = 4 * tb * C * 4
    vmem_limit = int(min(max(in_bytes + tmp_bytes + (4 << 20), 16 << 20), 48 << 20))

    kernel = functools.partial(
        _logsoftmax_loss_kernel, true_b=B, tb=tb, nb_half=nb_half)

    def in_map(c, i):
        # Clamp so a fully-out-of-range block (odd nb_total on the second core)
        # re-reads the last valid block; its rows are masked out in-kernel.
        return (jnp.minimum(c * nb_half + i, nb_total - 1), 0)

    out = pl.pallas_call(
        kernel,
        out_shape=jax.ShapeDtypeStruct((n_cores, 8, 128), jnp.float32),
        grid=(n_cores, nb_half),
        in_specs=[
            pl.BlockSpec((tb, C), in_map),
            pl.BlockSpec((tb, C), in_map),
        ],
        out_specs=pl.BlockSpec((1, 8, 128), lambda c, i: (c, 0, 0)),
        compiler_params=pltpu.CompilerParams(
            dimension_semantics=("parallel", "arbitrary"),
            vmem_limit_bytes=vmem_limit,
        ),
    )(x, a)

    # Sum the per-core partials and apply the true-B mean in the wrapper.
    return jnp.sum(out[:, 0, 0]) * (1.0 / B)


def _reference(x, a):
    # Plain-JAX reference matching the PyTorch module.
    x = x.astype(jnp.float32)
    a = a.astype(jnp.float32)
    nll = -jax.nn.log_softmax(x, axis=1)
    denom = jnp.maximum(jnp.sum(a, axis=1, keepdims=True), 1.0)  # clamp(min=1)
    return jnp.mean(jnp.sum(nll * a / denom, axis=1))


if __name__ == "__main__":
    key = jax.random.PRNGKey(0)
    kx, ka, kx2, ka2 = jax.random.split(key, 4)

    # Case 1: small single-tile shape (matches the module's 2-D usage).
    B, C = 8, 32
    x = jax.random.normal(kx, (B, C), dtype=jnp.float32)
    a = jax.random.uniform(ka, (B, C), dtype=jnp.float32)  # non-negative weights
    out = jax.block_until_ready(log_softmax_loss(x, a, dim=1))
    ref = jax.block_until_ready(_reference(x, a))
    assert jnp.allclose(out, ref, atol=1e-5, rtol=1e-4), (out, ref)

    # Case 2: multi-tile ragged batch (exercises the in-kernel row mask, the
    # two-core grid split, per-core accumulators, and the true-B mean) without
    # any wrapper-side padding.
    B2, C2 = 50, 128
    x2 = jax.random.normal(kx2, (B2, C2), dtype=jnp.float32)
    a2 = jax.random.uniform(ka2, (B2, C2), dtype=jnp.float32)
    out2 = jax.block_until_ready(log_softmax_loss(x2, a2, dim=1, tb=16))
    ref2 = jax.block_until_ready(_reference(x2, a2))
    assert jnp.allclose(out2, ref2, atol=1e-5, rtol=1e-4), (out2, ref2)

    print("KERNEL_OK")
</pallas_src>

<mosaic_0001>
module attributes {stable_mosaic.version = 11 : i64} {
  func.func @_logsoftmax_loss_kernel(%arg0: i32, %arg1: i32, %arg2: memref<8x32xf32, #tpu.memory_space<vmem>>, %arg3: memref<8x32xf32, #tpu.memory_space<vmem>>, %arg4: memref<1x8x128xf32, #tpu.memory_space<vmem>>) attributes {dimension_semantics = [#tpu.dimension_semantics<parallel>, #tpu.dimension_semantics<arbitrary>], iteration_bounds = array<i64: 2, 1>, scalar_prefetch = 0 : i64, scratch_operands = 0 : i64, tpu.core_type = #tpu.core_type<tc>, window_params = [{transform_indices = @transform_0, window_bounds = array<i64: 8, 32>}, {transform_indices = @transform_1, window_bounds = array<i64: 8, 32>}, {transform_indices = @transform_2, window_bounds = array<i64: 1, 8, 128>}]} {
    %c0_i32 = arith.constant 0 : i32
    %0 = arith.cmpi eq, %arg1, %c0_i32 : i32
    %1 = arith.extui %0 : i1 to i32
    %c0_i32_0 = arith.constant 0 : i32
    %2 = arith.cmpi ne, %1, %c0_i32_0 : i32
    scf.if %2 {
      %cst_18 = arith.constant 0.000000e+00 : f32
      %48 = vector.broadcast %cst_18 : f32 to vector<1x8x128xf32>
      %c0_19 = arith.constant 0 : index
      %c0_20 = arith.constant 0 : index
      %c0_21 = arith.constant 0 : index
      %49 = vector.load %arg4[%c0_19, %c0_20, %c0_21] : memref<1x8x128xf32, #tpu.memory_space<vmem>>, vector<1x8x128xf32>
      tpu.vector_store %arg4[%c0_19, %c0_20, %c0_21], %48 {strides = array<i32>} : memref<1x8x128xf32, #tpu.memory_space<vmem>>, vector<1x8x128xf32>,
    } else {
    }
    %c1_i32 = arith.constant 1 : i32
    %3 = arith.muli %arg0, %c1_i32 : i32
    %4 = arith.addi %3, %arg1 : i32
    %c8_i32 = arith.constant 8 : i32
    %5 = arith.muli %4, %c8_i32 : i32
    %6 = tpu.iota {dimensions = array<i32: 0>} : vector<8x1xi32>
    %7 = vector.broadcast %5 : i32 to vector<8x1xi32>
    %8 = arith.addi %7, %6 : vector<8x1xi32>
    %c8_i32_1 = arith.constant 8 : i32
    %9 = vector.broadcast %c8_i32_1 : i32 to vector<8x1xi32>
    %10 = arith.cmpi slt, %8, %9 : vector<8x1xi32>
    %c0 = arith.constant 0 : index
    %c0_2 = arith.constant 0 : index
    %11 = vector.load %arg2[%c0, %c0_2] : memref<8x32xf32, #tpu.memory_space<vmem>>, vector<8x32xf32>
    %cst = arith.constant 0.000000e+00 : f32
    %12 = vector.shape_cast %10 : vector<8x1xi1> to vector<8x1xi1>
    %13 = vector.broadcast %12 : vector<8x1xi1> to vector<8x32xi1>
    %14 = vector.broadcast %cst : f32 to vector<8x32xf32>
    %15 = arith.select %13, %11, %14 : vector<8x32xi1>, vector<8x32xf32>
    %c0_3 = arith.constant 0 : index
    %c0_4 = arith.constant 0 : index
    %16 = vector.load %arg3[%c0_3, %c0_4] : memref<8x32xf32, #tpu.memory_space<vmem>>, vector<8x32xf32>
    %cst_5 = arith.constant 0.000000e+00 : f32
    %17 = vector.shape_cast %10 : vector<8x1xi1> to vector<8x1xi1>
    %18 = vector.broadcast %17 : vector<8x1xi1> to vector<8x32xi1>
    %19 = vector.broadcast %cst_5 : f32 to vector<8x32xf32>
    %20 = arith.select %18, %16, %19 : vector<8x32xi1>, vector<8x32xf32>
    %cst_6 = arith.constant dense<0xFF800000> : vector<8xf32>
    %21 = vector.multi_reduction <maximumf>, %15, %cst_6 [1] : vector<8x32xf32> to vector<8xf32>
    %22 = vector.shape_cast %21 : vector<8xf32> to vector<8x1xf32>
    %23 = vector.broadcast %22 : vector<8x1xf32> to vector<8x32xf32>
    %24 = arith.subf %15, %23 : vector<8x32xf32>
    %25 = math.exp %24 : vector<8x32xf32>
    %cst_7 = arith.constant dense<0.000000e+00> : vector<8xf32>
    %26 = vector.multi_reduction <add>, %25, %cst_7 [1] : vector<8x32xf32> to vector<8xf32>
    %27 = vector.shape_cast %26 : vector<8xf32> to vector<8x1xf32>
    %28 = math.log %27 : vector<8x1xf32>
    %29 = arith.addf %28, %22 : vector<8x1xf32>
    %cst_8 = arith.constant dense<0.000000e+00> : vector<8xf32>
    %30 = vector.multi_reduction <add>, %20, %cst_8 [1] : vector<8x32xf32> to vector<8xf32>
    %31 = vector.shape_cast %30 : vector<8xf32> to vector<8x1xf32>
    %32 = vector.broadcast %29 : vector<8x1xf32> to vector<8x32xf32>
    %33 = arith.subf %32, %15 : vector<8x32xf32>
    %34 = arith.mulf %33, %20 : vector<8x32xf32>
    %cst_9 = arith.constant dense<0.000000e+00> : vector<8xf32>
    %35 = vector.multi_reduction <add>, %34, %cst_9 [1] : vector<8x32xf32> to vector<8xf32>
    %36 = vector.shape_cast %35 : vector<8xf32> to vector<8x1xf32>
    %cst_10 = arith.constant 1.000000e+00 : f32
    %37 = vector.broadcast %cst_10 : f32 to vector<8x1xf32>
    %38 = arith.maximumf %31, %37 : vector<8x1xf32>
    %39 = arith.divf %36, %38 : vector<8x1xf32>
    %40 = vector.shape_cast %39 : vector<8x1xf32> to vector<1x8x1xf32>
    %cst_11 = arith.constant dense<0.000000e+00> : vector<1xf32>
    %41 = vector.multi_reduction <add>, %40, %cst_11 [1, 2] : vector<1x8x1xf32> to vector<1xf32>
    %42 = vector.shape_cast %41 : vector<1xf32> to vector<1x1x1xf32>
    %43 = vector.extract %42[0, 0, 0] : f32 from vector<1x1x1xf32>
    %c0_12 = arith.constant 0 : index
    %c0_13 = arith.constant 0 : index
    %c0_14 = arith.constant 0 : index
    %44 = vector.load %arg4[%c0_12, %c0_13, %c0_14] : memref<1x8x128xf32, #tpu.memory_space<vmem>>, vector<1x8x128xf32>
    %45 = vector.broadcast %43 : f32 to vector<1x8x128xf32>
    %46 = arith.addf %44, %45 : vector<1x8x128xf32>
    %c0_15 = arith.constant 0 : index
    %c0_16 = arith.constant 0 : index
    %c0_17 = arith.constant 0 : index
    %47 = vector.load %arg4[%c0_15, %c0_16, %c0_17] : memref<1x8x128xf32, #tpu.memory_space<vmem>>, vector<1x8x128xf32>
    tpu.vector_store %arg4[%c0_15, %c0_16, %c0_17], %46 {strides = array<i32>} : memref<1x8x128xf32, #tpu.memory_space<vmem>>, vector<1x8x128xf32>,
    return
  }
  func.func @transform_0(%arg0: i32, %arg1: i32) -> (i32, i32) {
    %c1_i32 = arith.constant 1 : i32
    %0 = arith.muli %arg0, %c1_i32 : i32
    %1 = arith.addi %0, %arg1 : i32
    %c0_i32 = arith.constant 0 : i32
    %2 = arith.minsi %1, %c0_i32 : i32
    %c0_i32_0 = arith.constant 0 : i32
    %c0_i32_1 = arith.constant 0 : i32
    return %2, %c0_i32_0 : i32, i32
  }
  func.func @transform_1(%arg0: i32, %arg1: i32) -> (i32, i32) {
    %c1_i32 = arith.constant 1 : i32
    %0 = arith.muli %arg0, %c1_i32 : i32
    %1 = arith.addi %0, %arg1 : i32
    %c0_i32 = arith.constant 0 : i32
    %2 = arith.minsi %1, %c0_i32 : i32
    %c0_i32_0 = arith.constant 0 : i32
    %c0_i32_1 = arith.constant 0 : i32
    return %2, %c0_i32_0 : i32, i32
  }
  func.func @transform_2(%arg0: i32, %arg1: i32) -> (i32, i32, i32) {
    %c0_i32 = arith.constant 0 : i32
    %c0_i32_0 = arith.constant 0 : i32
    %c0_i32_1 = arith.constant 0 : i32
    return %arg0, %c0_i32, %c0_i32_0 : i32, i32, i32
  }
}

</mosaic_0001>

<llo_original>
// kernel: tpu_custom_call.1
$region0: #{tpu_custom_call.1}
  #allocation0 [shape = 'u32[]', space=smem, size = 0x4, offset = 0x4, fixed_abs, tag = 'smem constant byte address 0x4 - core index']
  #allocation1 [shape = 'u32[144,128]{1,0:T(1,128)}', space=vmem, size = 0x12000, scoped, tag = 'internal scratch']
  %s0 = inlined_call_operand.hbm [shape: f32[8,32], index: 0, kind: input, shape index: {}]
  %s1 = inlined_call_operand.hbm [shape: f32[8,32], index: 1, kind: input, shape index: {}]
  %s2 = inlined_call_operand.hbm [shape: f32[2,8,128], index: 2, kind: output, shape index: {}]
  %s3 = sld [smem:[#allocation0]]
  $region53: #{tpu_custom_call.1} parent=0
    _
  %s5 = ssub.s32 1, %s3
  %s6 = scalar_select 0, %s5, %s3
  $region1: #{tpu_custom_call.1} parent=0
    #allocation2 [shape = 'u8[8192]{0}', space=vmem, size = 0x2000, scoped, tag = 'input window, operand 0']
    #allocation3 [shape = 's32[2]{0}', space=sflag, size = 0x8, scoped, tag = 'scoped memory for tpu_custom_call.1']
    #allocation4 [shape = 's32[2]{0}', space=sflag, size = 0x8, scoped, tag = 'scoped memory for tpu_custom_call.1']
    #allocation5 [shape = 'u8[8192]{0}', space=vmem, size = 0x2000, scoped, tag = 'input window, operand 1']
    #allocation6 [shape = 's32[2]{0}', space=sflag, size = 0x8, scoped, tag = 'scoped memory for tpu_custom_call.1']
    #allocation7 [shape = 'u8[8192]{0}', space=vmem, size = 0x2000, scoped, tag = 'output window, operand 0']
    %7 = vsyncpa [#allocation3], 0
    %s8 = scalar_lea.sflag [#allocation3], 1
    %9 = vsyncpa %s8, 0
    %10 = vsyncpa [#allocation6], 0
    %s11 = scalar_lea.sflag [#allocation6], 1
    %12 = vsyncpa %s11, 0
    %13 = vsyncpa [#allocation4], 0
    %s14 = scalar_lea.sflag [#allocation4], 1
    %15 = vsyncpa %s14, 0
    loop: start=0, step=1, limit=4
    $region2: #{tpu_custom_call.1} parent=1 // loop_pre_header
      _
    $region3: #{tpu_custom_call.1} parent=1 // loop_header
      %s17 = sphi 0, %s21
      %p18 = scmp.ge.s32.totalorder %s17, 4
      %s24 = sphi 0, %s36
      %s25 = sphi 0, %s32
      %s26 = sphi 0, %s24
      %s27 = sphi 0, %s25
      %s28 = sphi 0, %s26
      %s29 = sphi 0, %s27
      %s45 = sphi 0, %s47
      %s48 = sphi 0, %s45
      %s49 = sphi 0, %s48
      %s65 = sphi 0, %s49
      %s77 = sphi 0, %s79
      %s80 = sphi 0, %s77
      %s81 = sphi 0, %s80
      %s97 = sphi 0, %s81
      %s103 = sphi 0, %s105
      %s106 = sphi 0, %s103
      %s107 = sphi 0, %s106
      %s123 = sphi 0, %s107
    $region4: #{tpu_custom_call.1} parent=1 // loop_header_branch
      %20 = sbr.rel (%p18) target = $region8
    $region5: #{tpu_custom_call.1} parent=1 // loop_body
      %s22 = ssub.s32 %s17, 1
      %s23 = ssub.s32 %s17, 2
      %s30 = sadd.s32 1, %s25
      %p31 = scmp.ge.s32.totalorder %s30, 1
      %s32 = scalar_select %p31, 0, %s30
      %s33 = sadd.s32 1, %s24
      %s34 = scalar_select %p31, %s33, %s24
      %p35 = scmp.ge.s32.totalorder %s34, 2
      %s36 = scalar_select %p35, 0, %s34
      %s37 = sadd.s32 %s24, %s25
      %p38 = scmp.lt.s32.totalorder %s37, 0
      %s39 = scalar_select %p38, %s37, 0
      %s40 = sadd.s32 %s36, %s32
      %p41 = scmp.lt.s32.totalorder %s40, 0
      %s42 = scalar_select %p41, %s40, 0
      %s43 = ssub.s32 %s39, %s42
      %p44 = scmp.eq.s32.totalorder %s43, 0
      %s46 = sadd.s32 %s45, 1
      %s47 = scalar_select %p44, %s45, %s46
      %p50 = pneg %p44
      %p51 = scmp.eq.s32.totalorder %s17, 1
      %p52 = por %p50, %p51
      %p53 = scmp.ne.s32.totalorder %s45, %s48
      %p54 = scmp.eq.s32.totalorder %s17, 0
      %p55 = por %p53, %p54
      %p56 = scmp.ne.s32.totalorder %s45, %s48
      %p57 = scmp.eq.s32.totalorder %s22, 1
      %p58 = por %p56, %p57
      %p59 = scmp.ne.s32.totalorder %s48, %s49
      %p60 = scmp.eq.s32.totalorder %s22, 0
      %p61 = por %p59, %p60
      %p62 = scmp.ne.s32.totalorder %s48, %s49
      %p63 = scmp.eq.s32.totalorder %s23, 1
      %p64 = por %p62, %p63
      %p66 = scmp.ne.s32.totalorder %s49, %s65
      %p67 = scmp.eq.s32.totalorder %s23, 0
      %p68 = por %p66, %p67
      %s69 = sadd.s32 %s24, %s25
      %p70 = scmp.lt.s32.totalorder %s69, 0
      %s71 = scalar_select %p70, %s69, 0
      %s72 = sadd.s32 %s36, %s32
      %p73 = scmp.lt.s32.totalorder %s72, 0
      %s74 = scalar_select %p73, %s72, 0
      %s75 = ssub.s32 %s71, %s74
      %p76 = scmp.eq.s32.totalorder %s75, 0
      %s78 = sadd.s32 %s77, 1
      %s79 = scalar_select %p76, %s77, %s78
      %p82 = pneg %p76
      %p83 = scmp.eq.s32.totalorder %s17, 1
      %p84 = por %p82, %p83
      %p85 = scmp.ne.s32.totalorder %s77, %s80
      %p86 = scmp.eq.s32.totalorder %s17, 0
      %p87 = por %p85, %p86
      %p88 = scmp.ne.s32.totalorder %s77, %s80
      %p89 = scmp.eq.s32.totalorder %s22, 1
      %p90 = por %p88, %p89
      %p91 = scmp.ne.s32.totalorder %s80, %s81
      %p92 = scmp.eq.s32.totalorder %s22, 0
      %p93 = por %p91, %p92
      %p94 = scmp.ne.s32.totalorder %s80, %s81
      %p95 = scmp.eq.s32.totalorder %s23, 1
      %p96 = por %p94, %p95
      %p98 = scmp.ne.s32.totalorder %s81, %s97
      %p99 = scmp.eq.s32.totalorder %s23, 0
      %p100 = por %p98, %p99
      %s101 = ssub.s32 %s24, %s36
      %p102 = scmp.eq.s32.totalorder %s101, 0
      %s104 = sadd.s32 %s103, 1
      %s105 = scalar_select %p102, %s103, %s104
      %p108 = pneg %p102
      %p109 = scmp.eq.s32.totalorder %s17, 1
      %p110 = por %p108, %p109
      %p111 = scmp.ne.s32.totalorder %s103, %s106
      %p112 = scmp.eq.s32.totalorder %s17, 0
      %p113 = por %p111, %p112
      %p114 = scmp.ne.s32.totalorder %s103, %s106
      %p115 = scmp.eq.s32.totalorder %s22, 1
      %p116 = por %p114, %p115
      %p117 = scmp.ne.s32.totalorder %s106, %s107
      %p118 = scmp.eq.s32.totalorder %s22, 0
      %p119 = por %p117, %p118
      %p120 = scmp.ne.s32.totalorder %s106, %s107
      %p121 = scmp.eq.s32.totalorder %s23, 1
      %p122 = por %p120, %p121
      %p124 = scmp.ne.s32.totalorder %s107, %s123
      %p125 = scmp.eq.s32.totalorder %s23, 0
      %p126 = por %p124, %p125
      %p127 = scmp.le.s32.totalorder 1, %s17
      %p128 = scmp.lt.s32.totalorder %s17, 3
      %p129 = pnand %p127, %p128
      %p130 = pneg %p129
      // Predicated region
      $region9: #{tpu_custom_call.1} parent=5 // pred_check
        _
      $region10: #{tpu_custom_call.1} parent=5 // pred_check_branch
        %132 = sbr.rel (%p129) target = $region12
      $region11: #{tpu_custom_call.1} parent=5 // pred_region
        %s133 = ssub.s32 %s17, 1
      $region12: #{tpu_custom_call.1} parent=5 // pred_fallthru
        _
      %p134 = scmp.lt.s32.totalorder %s17, 2
      // Predicated region
      $region13: #{tpu_custom_call.1} parent=5 // pred_check
        %p135 = pneg %p134
      $region14: #{tpu_custom_call.1} parent=5 // pred_check_branch
        %137 = sbr.rel (%p135) target = $region16
      $region15: #{tpu_custom_call.1} parent=5 // pred_region
        // Predicated region
        $region17: #{tpu_custom_call.1} parent=15 // pred_check
          %p138 = pneg %p55
        $region18: #{tpu_custom_call.1} parent=15 // pred_check_branch
          %140 = sbr.rel (%p138) target = $region20
        $region19: #{tpu_custom_call.1} parent=15 // pred_region
          %s141 = sand.u32 %s45, 1
          %s142 = scalar_lea.sflag [#allocation3], %s141
          %s143 = sand.u32 %s45, 1
          %s144 = smul.addr %s143, 8
          %s145 = scalar_lea.vmem [#allocation2], %s144
          %s146 = sadd.s32 %s24, %s25
          %p147 = scmp.lt.s32.totalorder %s146, 0
          %s148 = scalar_select %p147, %s146, 0
          %s150 = ssub.s32 128, 128
          %151 = vsyncadd %s142, %s150
          %s152 = smul.addr %s148, 128
          %s153 = scalar_lea.hbm %s0, %s152
          %s155 = sshll.u32 %s145, 4
          %s156 = int_to_ptr.vmem [resolvable:$true] %s155
          %158 = dma.hbm_to_vmem [thread:$0]  %s153, 128, %s156, %s142
        $region20: #{tpu_custom_call.1} parent=15 // pred_fallthru
          _
        // Predicated region
        $region21: #{tpu_custom_call.1} parent=15 // pred_check
          %p159 = pneg %p87
        $region22: #{tpu_custom_call.1} parent=15 // pred_check_branch
          %161 = sbr.rel (%p159) target = $region24
        $region23: #{tpu_custom_call.1} parent=15 // pred_region
          %s162 = sand.u32 %s77, 1
          %s163 = scalar_lea.sflag [#allocation6], %s162
          %s164 = sand.u32 %s77, 1
          %s165 = smul.addr %s164, 8
          %s166 = scalar_lea.vmem [#allocation5], %s165
          %s167 = sadd.s32 %s24, %s25
          %p168 = scmp.lt.s32.totalorder %s167, 0
          %s169 = scalar_select %p168, %s167, 0
          %s171 = ssub.s32 128, 128
          %172 = vsyncadd %s163, %s171
          %s173 = smul.addr %s169, 128
          %s174 = scalar_lea.hbm %s1, %s173
          %s176 = sshll.u32 %s166, 4
          %s177 = int_to_ptr.vmem [resolvable:$true] %s176
          %179 = dma.hbm_to_vmem [thread:$0]  %s174, 128, %s177, %s163
        $region24: #{tpu_custom_call.1} parent=15 // pred_fallthru
          _
      $region16: #{tpu_custom_call.1} parent=5 // pred_fallthru
        _
      %p180 = scmp.le.s32.totalorder 1, %s17
      %p181 = scmp.lt.s32.totalorder %s17, 3
      %p182 = pnand %p180, %p181
      %p183 = pneg %p182
      // Predicated region
      $region25: #{tpu_custom_call.1} parent=5 // pred_check
        _
      $region26: #{tpu_custom_call.1} parent=5 // pred_check_branch
        %185 = sbr.rel (%p182) target = $region28
      $region27: #{tpu_custom_call.1} parent=5 // pred_region
        %s186 = ssub.s32 %s17, 1
        %s187 = sand.u32 %s48, 1
        %s188 = scalar_lea.sflag [#allocation3], %s187
        %s189 = sand.u32 %s48, 1
        %s190 = smul.addr %s189, 8
        %s191 = scalar_lea.vmem [#allocation2], %s190
        // Predicated region
        $region29: #{tpu_custom_call.1} parent=27 // pred_check
          %p192 = pneg %p61
        $region30: #{tpu_custom_call.1} parent=27 // pred_check_branch
          %194 = sbr.rel (%p192) target = $region32
        $region31: #{tpu_custom_call.1} parent=27 // pred_region
          %195 = dma.done %s188, 128
        $region32: #{tpu_custom_call.1} parent=27 // pred_fallthru
          _
        %s196 = sand.u32 %s80, 1
        %s197 = scalar_lea.sflag [#allocation6], %s196
        %s198 = sand.u32 %s80, 1
        %s199 = smul.addr %s198, 8
        %s200 = scalar_lea.vmem [#allocation5], %s199
        // Predicated region
        $region33: #{tpu_custom_call.1} parent=27 // pred_check
          %p201 = pneg %p93
        $region34: #{tpu_custom_call.1} parent=27 // pred_check_branch
          %203 = sbr.rel (%p201) target = $region36
        $region35: #{tpu_custom_call.1} parent=27 // pred_region
          %204 = dma.done %s197, 128
        $region36: #{tpu_custom_call.1} parent=27 // pred_fallthru
          _
        %s205 = sand.u32 %s48, 1
        %s206 = scalar_lea.sflag [#allocation3], %s205
        %s207 = sand.u32 %s48, 1
        %s208 = smul.addr %s207, 8
        %s209 = scalar_lea.vmem [#allocation2], %s208
        %p210 = pneg %p61
        %p211 = pneg %p58
        %s212 = sand.u32 %s80, 1
        %s213 = scalar_lea.sflag [#allocation6], %s212
        %s214 = sand.u32 %s80, 1
        %s215 = smul.addr %s214, 8
        %s216 = scalar_lea.vmem [#allocation5], %s215
        %p217 = pneg %p93
        %p218 = pneg %p90
        %p219 = pneg %p119
        %p220 = pneg %p116
        %s221 = sand.u32 %s106, 1
        %s222 = scalar_lea.sflag [#allocation4], %s221
        %s223 = sand.u32 %s106, 1
        %s224 = smul.addr %s223, 8
        %s225 = scalar_lea.vmem [#allocation7], %s224
        %s226 = sadd.s32 %s26, %s27
        %p227 = scmp.lt.s32.totalorder %s226, 0
        %s228 = scalar_select %p227, %s226, 0
        %s229 = sadd.s32 %s26, %s27
        %p230 = scmp.lt.s32.totalorder %s229, 0
        %s231 = scalar_select %p230, %s229, 0
        %p232 = scmp.eq.s32.totalorder %s27, 0
        // Predicated region
        $region37: #{tpu_custom_call.1} parent=27 // pred_check
          %p233 = pneg %p232
        $region38: #{tpu_custom_call.1} parent=27 // pred_check_branch
          %235 = sbr.rel (%p233) target = $region40
        $region39: #{tpu_custom_call.1} parent=27 // pred_region
          %236 = vst [vmem:[%s225] sm:$0xff] 0.0
        $region40: #{tpu_custom_call.1} parent=27 // pred_fallthru
          _
        %s237 = sadd.s32 %s26, %s27
        %s238 = smul.u32 %s237, 8
        %v239 = vlaneseq
        %v240 = vshrl.u32 %v239, 7
        %v241 = vstv %s238
        %v242 = vadd.s32 %v241, %v240
        %vm243 = vcmp.lt.s32.totalorder %v242, 8
        %v244 = vld [vmem:[%s191] sm:$0xff]
        %v245 = vsel %vm243, 1, 0
        %vm246 = vcmp.eq.s32.totalorder %v245, 1
        %v247 = vsel %vm246, %v244, 0.0
        %v248 = vld [vmem:[%s200] sm:$0xff]
        %v249 = vsel %vm246, %v248, 0.0
        %vm250 = vcmask 261120
        %v251 = vsel %vm250, %v247, -inf
        %252 = vmax.xlane.f32.xlu0 %v251
        %v253 = vpop.xlane.xlu0 %252
        %v254 = vsub.f32 %v247, %v253
        %v255 = vmul.f32 %v254, 1.442695
        %v256 = vpow.pop %v255
        %v257 = vsel %vm250, %v256, 0.0
        %258 = vadd.xlane.f32.xlu0 %v257
        %v259 = vpop.xlane.xlu0 %258
        %v260 = vlog2.pop %v259
        %v261 = vmul.f32 %v260, 0.6931472
        %v262 = vadd.f32 %v261, %v253
        %v263 = vsel %vm250, %v249, 0.0
        %264 = vadd.xlane.f32.xlu0 %v263
        %v265 = vpop.xlane.xlu0 %264
        %v266 = vsub.f32 %v262, %v247
        %v267 = vmul.f32 %v266, %v249
        %v268 = vsel %vm250, %v267, 0.0
        %269 = vadd.xlane.f32.xlu0 %v268
        %v270 = vpop.xlane.xlu0 %269
        %v271 = vmax.f32 %v265, 1.0
        %v272 = vrcp.pop %v271
        %v273 = vmul.f32 %v270, %v272
        %vm274 = vcmask 7168
        %v275 = vsel %vm274, %v273, 0.0
        %276 = vadd.xlane.f32.xlu0 %v275
        %v277 = vpop.xlane.xlu0 %276
        %v278 = vrot.slane %v277, 4
        %v279 = vadd.f32 %v277, %v278
        %v280 = vrot.slane %v279, 2
        %v281 = vadd.f32 %v279, %v280
        %v282 = vrot.slane %v281, 1
        %v283 = vadd.f32 %v281, %v282
        %s284 = vtos %v283
        %v285 = vld [vmem:[%s225] sm:$0xff]
        %v286 = vstv %s284
        %v287 = vadd.f32 %v285, %v286
        %288 = vst [vmem:[%s225] sm:$0xff] %v287
        %s289 = sand.u32 %s106, 1
        %s290 = scalar_lea.sflag [#allocation4], %s289
        %s291 = sand.u32 %s106, 1
        %s292 = smul.addr %s291, 8
        %s293 = scalar_lea.vmem [#allocation7], %s292
        // Predicated region
        $region41: #{tpu_custom_call.1} parent=27 // pred_check
          %p294 = pneg %p116
        $region42: #{tpu_custom_call.1} parent=27 // pred_check_branch
          %296 = sbr.rel (%p294) target = $region44
        $region43: #{tpu_custom_call.1} parent=27 // pred_region
          %s298 = ssub.s32 128, 128
          %299 = vsyncadd %s290, %s298
          %s300 = smul.addr %s26, 128
          %s301 = scalar_lea.hbm %s2, %s300
          %s303 = sshll.u32 %s293, 4
          %s304 = int_to_ptr.vmem [resolvable:$true] %s303
          %306 = dma.vmem_to_hbm [thread:$0]  %s304, 128, %s301, %s290
        $region44: #{tpu_custom_call.1} parent=27 // pred_fallthru
          _
      $region28: #{tpu_custom_call.1} parent=5 // pred_fallthru
        _
      %p307 = scmp.le.s32.totalorder 2, %s17
      // Predicated region
      $region45: #{tpu_custom_call.1} parent=5 // pred_check
        %p308 = pneg %p307
      $region46: #{tpu_custom_call.1} parent=5 // pred_check_branch
        %310 = sbr.rel (%p308) target = $region48
      $region47: #{tpu_custom_call.1} parent=5 // pred_region
        %s311 = ssub.s32 %s17, 2
        // Predicated region
        $region49: #{tpu_custom_call.1} parent=47 // pred_check
          %p312 = pneg %p122
        $region50: #{tpu_custom_call.1} parent=47 // pred_check_branch
          %314 = sbr.rel (%p312) target = $region52
        $region51: #{tpu_custom_call.1} parent=47 // pred_region
          %s315 = sand.u32 %s107, 1
          %s316 = scalar_lea.sflag [#allocation4], %s315
          %s317 = sand.u32 %s107, 1
          %s318 = smul.addr %s317, 8
          %s319 = scalar_lea.vmem [#allocation7], %s318
          %320 = dma.done %s316, 128
        $region52: #{tpu_custom_call.1} parent=47 // pred_fallthru
          _
      $region48: #{tpu_custom_call.1} parent=5 // pred_fallthru
        _
    $region6: #{tpu_custom_call.1} parent=1 // loop_footer
      %s21 = sadd.s32 1, %s17
    $region7: #{tpu_custom_call.1} parent=1 // loop_footer_branch
      %16 = sbr.rel target = $region3
    $region8: #{tpu_custom_call.1} parent=1 // loop_exit
      _
    %321 = vsyncpa [#allocation3], 1
    %s322 = scalar_lea.sflag [#allocation3], 1
    %323 = vsyncpa %s322, 1
    %324 = vsyncpa [#allocation6], 1
    %s325 = scalar_lea.sflag [#allocation6], 1
    %326 = vsyncpa %s325, 1
    %327 = vsyncpa [#allocation4], 1
    %s328 = scalar_lea.sflag [#allocation4], 1
    %329 = vsyncpa %s328, 1

</llo_original>
